<compile_context>
chip_gen: v7x
topology: tpu7x:2x2x1
jax: 0.10.0
libtpu: 0.0.40
codegen_flags: <defaults>
</compile_context>

<pallas_src>
import functools

import jax
import jax.numpy as jnp
from jax.experimental import pallas as pl
from jax.experimental.pallas import tpu as pltpu


def _dsconv_kernel(x_ref, dw_ref, pw_ref, o_ref, *, K, Cout):
    # x_ref : (Cin, L)    flattened padded rows (row stride Wp), batch folded into L
    # dw_ref: (Cin, K)    depthwise 1xK filters (one per channel)
    # pw_ref: (Cout, Cin) pointwise 1x1 weights
    # o_ref : (Cout, L)   lane-dense output (L is a multiple of 128)
    x = x_ref[...].astype(jnp.float32)
    dw = dw_ref[...].astype(jnp.float32)
    pw = pw_ref[...].astype(jnp.float32)
    Cin, L = x.shape

    # --- Depthwise 1xK conv: shift-and-accumulate on the VPU.
    # Taps are XLU lane rotations of the single aligned base load:
    #   roll(x, L-k) == jnp.roll(x, -k)  =>  tap[:, j] = x[:, (j + k) % L]
    # Wrap-around only lands at flat positions j >= Wout inside the last padded
    # row (or the tail round-up region), all discarded by the wrapper.
    acc = x * dw[:, 0:1]
    for k in range(1, K):                       # K is static -> fully unrolled
        tap = pltpu.roll(x, L - k, axis=1)
        acc = acc + tap * dw[:, k : k + 1]

    # --- Pointwise 1x1 conv on the VPU (MXU mapping at (8, 4) contraction is
    # pathological for a latency-bound kernel):
    #   out[co, :] = sum_ci pw[co, ci] * acc[ci, :]
    # Cin broadcast-FMAs over the (Cout, L) slab; single unmasked store.
    out = pw[:, 0:1] * jnp.broadcast_to(acc[0:1, :], (Cout, L))
    for ci in range(1, Cin):
        out = out + pw[:, ci : ci + 1] * jnp.broadcast_to(acc[ci : ci + 1, :], (Cout, L))

    o_ref[...] = out.astype(o_ref.dtype)


def deepwise_separable_conv(x, dw_weight, pw_weight):
    """x: (N, Cin, H, W), dw_weight: (Cin, K), pw_weight: (Cout, Cin)."""
    N, Cin, H, W = x.shape
    Cout = pw_weight.shape[0]
    K = dw_weight.shape[1]
    pad = K // 2
    Wp = W + 2 * pad                      # padded row width
    Wout = W + 2 * pad - K + 1            # PyTorch conv output width formula

    # Flat lane axis: N*H rows of width Wp, rounded up to a multiple of 128 lanes.
    Lvalid = N * H * Wp
    L = ((Lvalid + 127) // 128) * 128     # = 640 for the example shapes

    # Wrapper-side layout plumbing (fuses with producers inside an outer jit):
    # time-axis zero pad (isolates row AND batch boundaries), channel-major
    # flatten, and tail pad to the 128-aligned lane width.
    xp = jnp.pad(x, ((0, 0), (0, 0), (0, 0), (pad, pad)))          # (N, Cin, H, Wp)
    xflat = jnp.transpose(xp, (1, 0, 2, 3)).reshape(Cin, Lvalid)   # (Cin, N*H*Wp)
    if L != Lvalid:
        xflat = jnp.pad(xflat, ((0, 0), (0, L - Lvalid)))

    kernel = functools.partial(_dsconv_kernel, K=K, Cout=Cout)
    out_wide = pl.pallas_call(
        kernel,
        out_shape=jax.ShapeDtypeStruct((Cout, L), x.dtype),
        grid=(1,),  # whole problem in one step (single TC on v5e/v6e; ~30 KB of VMEM)
        in_specs=[
            pl.BlockSpec((Cin, L), lambda i: (0, 0)),
            pl.BlockSpec((Cin, K), lambda i: (0, 0)),
            pl.BlockSpec((Cout, Cin), lambda i: (0, 0)),
        ],
        out_specs=pl.BlockSpec((Cout, L), lambda i: (0, 0)),
        compiler_params=pltpu.CompilerParams(
            dimension_semantics=("arbitrary",)),
    )(xflat, dw_weight, pw_weight)

    # Un-flatten: valid outputs of (batch n, row h) live at flat offsets
    # [n*H*Wp + h*Wp, ... + Wout).  Cheap slice + reshape + transpose in the wrapper.
    out = out_wide[:, :Lvalid].reshape(Cout, N, H, Wp)[:, :, :, :Wout]
    return jnp.transpose(out, (1, 0, 2, 3))


def _reference(x, dw_weight, pw_weight):
    """Pure-JAX reference matching PyTorch Conv2d semantics."""
    N, Cin, H, W = x.shape
    K = dw_weight.shape[1]
    pad = K // 2
    Wout = W + 2 * pad - K + 1
    xp = jnp.pad(x, ((0, 0), (0, 0), (0, 0), (pad, pad)))
    dw = jnp.zeros((N, Cin, H, Wout), jnp.float32)
    for k in range(K):
        dw = dw + xp[:, :, :, k:k + Wout].astype(jnp.float32) * \
            dw_weight[:, k][None, :, None, None].astype(jnp.float32)
    pw = jnp.einsum('oc,nchw->nohw', pw_weight.astype(jnp.float32), dw)
    return pw.astype(x.dtype)


if __name__ == "__main__":
    # Small shapes consistent with the module's forward:
    #   input (N, nin, H, W) = (2, 4, 16, 16), nout = 8, kernelSize = 5 (odd -> same W out)
    N, nin, nout, H, W, K = 2, 4, 8, 16, 16, 5

    key = jax.random.PRNGKey(0)
    kx, kdw, kpw = jax.random.split(key, 3)
    x = jax.random.normal(kx, (N, nin, H, W), dtype=jnp.float32)
    # PyTorch parameter shapes are dw (nin,1,1,K), pw (nout,nin,1,1); squeezed here.
    dw_weight = jax.random.normal(kdw, (nin, K), dtype=jnp.float32) * 0.1
    pw_weight = jax.random.normal(kpw, (nout, nin), dtype=jnp.float32) * 0.1

    out = deepwise_separable_conv(x, dw_weight, pw_weight)
    out = jax.block_until_ready(out)

    ref = _reference(x, dw_weight, pw_weight)
    assert out.shape == (N, nout, H, W), out.shape
    assert jnp.allclose(out, ref, atol=1e-5, rtol=1e-5), \
        float(jnp.max(jnp.abs(out - ref)))

    print("KERNEL_OK")
</pallas_src>

<mosaic_0001>
module attributes {stable_mosaic.version = 11 : i64} {
  func.func @_dsconv_kernel(%arg0: i32, %arg1: memref<4x640xf32, #tpu.memory_space<vmem>>, %arg2: memref<4x5xf32, #tpu.memory_space<vmem>>, %arg3: memref<8x4xf32, #tpu.memory_space<vmem>>, %arg4: memref<8x640xf32, #tpu.memory_space<vmem>>) attributes {dimension_semantics = [#tpu.dimension_semantics<arbitrary>], iteration_bounds = array<i64: 1>, scalar_prefetch = 0 : i64, scratch_operands = 0 : i64, tpu.core_type = #tpu.core_type<tc>, window_params = [{pipeline_mode = #tpu.pipeline_mode<synchronous>, transform_indices = @transform_0, window_bounds = array<i64: 4, 640>}, {pipeline_mode = #tpu.pipeline_mode<synchronous>, transform_indices = @transform_1, window_bounds = array<i64: 4, 5>}, {pipeline_mode = #tpu.pipeline_mode<synchronous>, transform_indices = @transform_2, window_bounds = array<i64: 8, 4>}, {pipeline_mode = #tpu.pipeline_mode<synchronous>, transform_indices = @transform_3, window_bounds = array<i64: 8, 640>}]} {
    %c0 = arith.constant 0 : index
    %c0_0 = arith.constant 0 : index
    %0 = vector.load %arg1[%c0, %c0_0] : memref<4x640xf32, #tpu.memory_space<vmem>>, vector<4x640xf32>
    %c0_1 = arith.constant 0 : index
    %c0_2 = arith.constant 0 : index
    %1 = vector.load %arg2[%c0_1, %c0_2] : memref<4x5xf32, #tpu.memory_space<vmem>>, vector<4x5xf32>
    %c0_3 = arith.constant 0 : index
    %c0_4 = arith.constant 0 : index
    %2 = vector.load %arg3[%c0_3, %c0_4] : memref<8x4xf32, #tpu.memory_space<vmem>>, vector<8x4xf32>
    %3 = vector.extract_strided_slice %1 {offsets = [0, 0], sizes = [4, 1], strides = [1, 1]} : vector<4x5xf32> to vector<4x1xf32>
    %4 = vector.broadcast %3 : vector<4x1xf32> to vector<4x640xf32>
    %5 = arith.mulf %0, %4 : vector<4x640xf32>
    %c639_i32 = arith.constant 639 : i32
    %6 = tpu.dynamic_rotate %0 by %c639_i32 dim 1 : vector<4x640xf32>, i32 -> vector<4x640xf32>
    %7 = vector.extract_strided_slice %1 {offsets = [0, 1], sizes = [4, 1], strides = [1, 1]} : vector<4x5xf32> to vector<4x1xf32>
    %8 = vector.broadcast %7 : vector<4x1xf32> to vector<4x640xf32>
    %9 = arith.mulf %6, %8 : vector<4x640xf32>
    %10 = arith.addf %5, %9 : vector<4x640xf32>
    %c638_i32 = arith.constant 638 : i32
    %11 = tpu.dynamic_rotate %0 by %c638_i32 dim 1 : vector<4x640xf32>, i32 -> vector<4x640xf32>
    %12 = vector.extract_strided_slice %1 {offsets = [0, 2], sizes = [4, 1], strides = [1, 1]} : vector<4x5xf32> to vector<4x1xf32>
    %13 = vector.broadcast %12 : vector<4x1xf32> to vector<4x640xf32>
    %14 = arith.mulf %11, %13 : vector<4x640xf32>
    %15 = arith.addf %10, %14 : vector<4x640xf32>
    %c637_i32 = arith.constant 637 : i32
    %16 = tpu.dynamic_rotate %0 by %c637_i32 dim 1 : vector<4x640xf32>, i32 -> vector<4x640xf32>
    %17 = vector.extract_strided_slice %1 {offsets = [0, 3], sizes = [4, 1], strides = [1, 1]} : vector<4x5xf32> to vector<4x1xf32>
    %18 = vector.broadcast %17 : vector<4x1xf32> to vector<4x640xf32>
    %19 = arith.mulf %16, %18 : vector<4x640xf32>
    %20 = arith.addf %15, %19 : vector<4x640xf32>
    %c636_i32 = arith.constant 636 : i32
    %21 = tpu.dynamic_rotate %0 by %c636_i32 dim 1 : vector<4x640xf32>, i32 -> vector<4x640xf32>
    %22 = vector.extract_strided_slice %1 {offsets = [0, 4], sizes = [4, 1], strides = [1, 1]} : vector<4x5xf32> to vector<4x1xf32>
    %23 = vector.broadcast %22 : vector<4x1xf32> to vector<4x640xf32>
    %24 = arith.mulf %21, %23 : vector<4x640xf32>
    %25 = arith.addf %20, %24 : vector<4x640xf32>
    %26 = vector.extract_strided_slice %2 {offsets = [0, 0], sizes = [8, 1], strides = [1, 1]} : vector<8x4xf32> to vector<8x1xf32>
    %27 = vector.extract_strided_slice %25 {offsets = [0, 0], sizes = [1, 640], strides = [1, 1]} : vector<4x640xf32> to vector<1x640xf32>
    %28 = vector.shape_cast %27 : vector<1x640xf32> to vector<1x640xf32>
    %29 = vector.broadcast %28 : vector<1x640xf32> to vector<8x640xf32>
    %30 = vector.broadcast %26 : vector<8x1xf32> to vector<8x640xf32>
    %31 = arith.mulf %30, %29 : vector<8x640xf32>
    %32 = vector.extract_strided_slice %2 {offsets = [0, 1], sizes = [8, 1], strides = [1, 1]} : vector<8x4xf32> to vector<8x1xf32>
    %33 = vector.extract_strided_slice %25 {offsets = [1, 0], sizes = [1, 640], strides = [1, 1]} : vector<4x640xf32> to vector<1x640xf32>
    %34 = vector.shape_cast %33 : vector<1x640xf32> to vector<1x640xf32>
    %35 = vector.broadcast %34 : vector<1x640xf32> to vector<8x640xf32>
    %36 = vector.broadcast %32 : vector<8x1xf32> to vector<8x640xf32>
    %37 = arith.mulf %36, %35 : vector<8x640xf32>
    %38 = arith.addf %31, %37 : vector<8x640xf32>
    %39 = vector.extract_strided_slice %2 {offsets = [0, 2], sizes = [8, 1], strides = [1, 1]} : vector<8x4xf32> to vector<8x1xf32>
    %40 = vector.extract_strided_slice %25 {offsets = [2, 0], sizes = [1, 640], strides = [1, 1]} : vector<4x640xf32> to vector<1x640xf32>
    %41 = vector.shape_cast %40 : vector<1x640xf32> to vector<1x640xf32>
    %42 = vector.broadcast %41 : vector<1x640xf32> to vector<8x640xf32>
    %43 = vector.broadcast %39 : vector<8x1xf32> to vector<8x640xf32>
    %44 = arith.mulf %43, %42 : vector<8x640xf32>
    %45 = arith.addf %38, %44 : vector<8x640xf32>
    %46 = vector.extract_strided_slice %2 {offsets = [0, 3], sizes = [8, 1], strides = [1, 1]} : vector<8x4xf32> to vector<8x1xf32>
    %47 = vector.extract_strided_slice %25 {offsets = [3, 0], sizes = [1, 640], strides = [1, 1]} : vector<4x640xf32> to vector<1x640xf32>
    %48 = vector.shape_cast %47 : vector<1x640xf32> to vector<1x640xf32>
    %49 = vector.broadcast %48 : vector<1x640xf32> to vector<8x640xf32>
    %50 = vector.broadcast %46 : vector<8x1xf32> to vector<8x640xf32>
    %51 = arith.mulf %50, %49 : vector<8x640xf32>
    %52 = arith.addf %45, %51 : vector<8x640xf32>
    %c0_5 = arith.constant 0 : index
    %c0_6 = arith.constant 0 : index
    %53 = vector.load %arg4[%c0_5, %c0_6] : memref<8x640xf32, #tpu.memory_space<vmem>>, vector<8x640xf32>
    tpu.vector_store %arg4[%c0_5, %c0_6], %52 {strides = array<i32>} : memref<8x640xf32, #tpu.memory_space<vmem>>, vector<8x640xf32>,
    return
  }
  func.func @transform_0(%arg0: i32) -> (i32, i32) {
    %c0_i32 = arith.constant 0 : i32
    %c0_i32_0 = arith.constant 0 : i32
    %c0_i32_1 = arith.constant 0 : i32
    return %c0_i32, %c0_i32_0 : i32, i32
  }
  func.func @transform_1(%arg0: i32) -> (i32, i32) {
    %c0_i32 = arith.constant 0 : i32
    %c0_i32_0 = arith.constant 0 : i32
    %c0_i32_1 = arith.constant 0 : i32
    return %c0_i32, %c0_i32_0 : i32, i32
  }
  func.func @transform_2(%arg0: i32) -> (i32, i32) {
    %c0_i32 = arith.constant 0 : i32
    %c0_i32_0 = arith.constant 0 : i32
    %c0_i32_1 = arith.constant 0 : i32
    return %c0_i32, %c0_i32_0 : i32, i32
  }
  func.func @transform_3(%arg0: i32) -> (i32, i32) {
    %c0_i32 = arith.constant 0 : i32
    %c0_i32_0 = arith.constant 0 : i32
    %c0_i32_1 = arith.constant 0 : i32
    return %c0_i32, %c0_i32_0 : i32, i32
  }
}

</mosaic_0001>

<llo_original>
// kernel: tpu_custom_call.1
$region0: #{tpu_custom_call.1}
  #allocation0 [shape = 'u32[]', space=smem, size = 0x4, offset = 0x4, fixed_abs, tag = 'smem constant byte address 0x4 - core index']
  #allocation1 [shape = 'u32[144,128]{1,0:T(1,128)}', space=vmem, size = 0x12000, scoped, tag = 'internal scratch']
  %s0 = inlined_call_operand.hbm [shape: f32[4,640], index: 0, kind: input, shape index: {}]
  %s1 = inlined_call_operand.vmem [shape: f32[4,5], index: 1, kind: input, shape index: {}]
  %s2 = inlined_call_operand.vmem [shape: f32[8,4], index: 2, kind: input, shape index: {}]
  %s3 = inlined_call_operand.hbm [shape: f32[8,640], index: 3, kind: output, shape index: {}]
  %s4 = sld [smem:[#allocation0]]
  $region26: #{tpu_custom_call.1} parent=0
    _
  %s6 = ssub.s32 1, %s4
  %s7 = scalar_select 0, %s6, %s4
  $region1: #{tpu_custom_call.1} parent=0
    #allocation2 [shape = 'u8[10240]{0}', space=vmem, size = 0x2800, scoped, tag = 'input window, operand 0, single buffered']
    #allocation3 [shape = 's32[1]{0}', space=sflag, size = 0x4, scoped, tag = 'scoped memory for tpu_custom_call.1']
    #allocation4 [shape = 's32[1]{0}', space=sflag, size = 0x4, scoped, tag = 'scoped memory for tpu_custom_call.1']
    #allocation5 [shape = 'u8[20480]{0}', space=vmem, size = 0x5000, scoped, tag = 'output window, operand 0, single buffered']
    %8 = vsyncpa [#allocation3], 0
    %9 = vsyncpa [#allocation4], 0
    // Predicated region
    $region2: #{tpu_custom_call.1} parent=1 // pred_check
      _
    $region3: #{tpu_custom_call.1} parent=1 // pred_check_branch
      %11 = sbr.rel (0) target = $region5
    $region4: #{tpu_custom_call.1} parent=1 // pred_region
      %s13 = ssub.s32 320, 320
      %14 = vsyncadd [#allocation3], %s13
      %s16 = sshll.u32 [#allocation2], 4
      %s17 = int_to_ptr.vmem [resolvable:$true] %s16
      %19 = dma.hbm_to_vmem [thread:$0]  %s0, 320, %s17, [#allocation3]
    $region5: #{tpu_custom_call.1} parent=1 // pred_fallthru
      _
    // Predicated region
    $region6: #{tpu_custom_call.1} parent=1 // pred_check
      _
    $region7: #{tpu_custom_call.1} parent=1 // pred_check_branch
      %21 = sbr.rel (0) target = $region9
    $region8: #{tpu_custom_call.1} parent=1 // pred_region
      _
    $region9: #{tpu_custom_call.1} parent=1 // pred_fallthru
      _
    // Predicated region
    $region10: #{tpu_custom_call.1} parent=1 // pred_check
      _
    $region11: #{tpu_custom_call.1} parent=1 // pred_check_branch
      %23 = sbr.rel (0) target = $region13
    $region12: #{tpu_custom_call.1} parent=1 // pred_region
      _
    $region13: #{tpu_custom_call.1} parent=1 // pred_fallthru
      _
    // Predicated region
    $region14: #{tpu_custom_call.1} parent=1 // pred_check
      _
    $region15: #{tpu_custom_call.1} parent=1 // pred_check_branch
      %25 = sbr.rel (0) target = $region17
    $region16: #{tpu_custom_call.1} parent=1 // pred_region
      %26 = dma.done [#allocation3], 320
    $region17: #{tpu_custom_call.1} parent=1 // pred_fallthru
      _
    %v27 = vld [vmem:[#allocation2] sm:$0xff]
    %v28 = vld [vmem:[#allocation2 + $0x8] sm:$0xff]
    %v29 = vld [vmem:[#allocation2 + $0x10] sm:$0xf]
    %v30 = vld [vmem:[%s1] sm:$0xf]
    %v31 = vld [vmem:[%s2] sm:$0xff]
    %33 = vset.pattern.permute.xlu0 0
    %34 = vperm.xlu0 %33, %v30
    %v35 = vpop.permute.xlu0 %34
    %v37 = vunpack.c.l.s4 839922192
    %v38 = vunpack.c.0.s8 %v37
    %v39 = vlaneseq
    %v40 = vshrl.u32 %v39, 7
    %v41 = vsub.s32 %v38, %v40
    %v42 = vrot.slane %v35, %v41
    %v44 = vmul.f32 %v27, %v42
    %v45 = vmul.f32 %v28, %v42
    %v46 = vmul.f32 %v29, %v42
    %v49 = vcombine.high %v27, %v27
    %v50 = vcombine.high %v28, %v28
    %53 = vrot.lane.b32.xlu0 %v27, 127
    %v54 = vpop.permute.xlu0 %53
    %55 = vrot.lane.b32.xlu0 %v49, 127
    %v56 = vpop.permute.xlu0 %55
    %57 = vrot.lane.b32.xlu0 %v28, 127
    %v58 = vpop.permute.xlu0 %57
    %59 = vrot.lane.b32.xlu0 %v50, 127
    %v60 = vpop.permute.xlu0 %59
    %61 = vrot.lane.b32.xlu0 %v29, 127
    %v62 = vpop.permute.xlu0 %61
    %v63 = vlaneseq
    %v64 = vand.u32 %v63, 127
    %vm65 = vcmp.lt.s32.totalorder %v64, 127
    %v66 = vsel %vm65, %v60, %v62
    %v67 = vsel %vm65, %v58, %v60
    %v68 = vsel %vm65, %v56, %v58
    %v69 = vsel %vm65, %v54, %v56
    %v70 = vsel %vm65, %v62, %v54
    %71 = vset.pattern.permute.xlu0 1
    %72 = vperm.xlu0 %71, %v30
    %v73 = vpop.permute.xlu0 %72
    %v75 = vmul.f32 %v69, %v73
    %v76 = vmul.f32 %v68, %v73
    %v77 = vmul.f32 %v67, %v73
    %v78 = vmul.f32 %v66, %v73
    %v79 = vmul.f32 %v70, %v73
    %v84 = vcombine.low %v75, %v76
    %v85 = vcombine.low %v77, %v78
    %v88 = vadd.f32 %v44, %v84
    %v89 = vadd.f32 %v45, %v85
    %v90 = vadd.f32 %v46, %v79
    %91 = vrot.lane.b32.xlu0 %v27, 126
    %v92 = vpop.permute.xlu0 %91
    %93 = vrot.lane.b32.xlu0 %v49, 126
    %v94 = vpop.permute.xlu0 %93
    %95 = vrot.lane.b32.xlu0 %v28, 126
    %v96 = vpop.permute.xlu0 %95
    %97 = vrot.lane.b32.xlu0 %v50, 126
    %v98 = vpop.permute.xlu0 %97
    %99 = vrot.lane.b32.xlu0 %v29, 126
    %v100 = vpop.permute.xlu0 %99
    %vm101 = vcmp.lt.s32.totalorder %v64, 126
    %v102 = vsel %vm101, %v98, %v100
    %v103 = vsel %vm101, %v96, %v98
    %v104 = vsel %vm101, %v94, %v96
    %v105 = vsel %vm101, %v92, %v94
    %v106 = vsel %vm101, %v100, %v92
    %107 = vset.pattern.permute.xlu0 2
    %108 = vperm.xlu0 %107, %v30
    %v109 = vpop.permute.xlu0 %108
    %v111 = vmul.f32 %v105, %v109
    %v112 = vmul.f32 %v104, %v109
    %v113 = vmul.f32 %v103, %v109
    %v114 = vmul.f32 %v102, %v109
    %v115 = vmul.f32 %v106, %v109
    %v120 = vcombine.low %v111, %v112
    %v121 = vcombine.low %v113, %v114
    %v124 = vadd.f32 %v88, %v120
    %v125 = vadd.f32 %v89, %v121
    %v126 = vadd.f32 %v90, %v115
    %127 = vrot.lane.b32.xlu0 %v27, 125
    %v128 = vpop.permute.xlu0 %127
    %129 = vrot.lane.b32.xlu0 %v49, 125
    %v130 = vpop.permute.xlu0 %129
    %131 = vrot.lane.b32.xlu0 %v28, 125
    %v132 = vpop.permute.xlu0 %131
    %133 = vrot.lane.b32.xlu0 %v50, 125
    %v134 = vpop.permute.xlu0 %133
    %135 = vrot.lane.b32.xlu0 %v29, 125
    %v136 = vpop.permute.xlu0 %135
    %vm137 = vcmp.lt.s32.totalorder %v64, 125
    %v138 = vsel %vm137, %v134, %v136
    %v139 = vsel %vm137, %v132, %v134
    %v140 = vsel %vm137, %v130, %v132
    %v141 = vsel %vm137, %v128, %v130
    %v142 = vsel %vm137, %v136, %v128
    %143 = vset.pattern.permute.xlu0 3
    %144 = vperm.xlu0 %143, %v30
    %v145 = vpop.permute.xlu0 %144
    %v147 = vmul.f32 %v141, %v145
    %v148 = vmul.f32 %v140, %v145
    %v149 = vmul.f32 %v139, %v145
    %v150 = vmul.f32 %v138, %v145
    %v151 = vmul.f32 %v142, %v145
    %v156 = vcombine.low %v147, %v148
    %v157 = vcombine.low %v149, %v150
    %v160 = vadd.f32 %v124, %v156
    %v161 = vadd.f32 %v125, %v157
    %v162 = vadd.f32 %v126, %v151
    %163 = vrot.lane.b32.xlu0 %v27, 124
    %v164 = vpop.permute.xlu0 %163
    %165 = vrot.lane.b32.xlu0 %v49, 124
    %v166 = vpop.permute.xlu0 %165
    %167 = vrot.lane.b32.xlu0 %v28, 124
    %v168 = vpop.permute.xlu0 %167
    %169 = vrot.lane.b32.xlu0 %v50, 124
    %v170 = vpop.permute.xlu0 %169
    %171 = vrot.lane.b32.xlu0 %v29, 124
    %v172 = vpop.permute.xlu0 %171
    %vm173 = vcmp.lt.s32.totalorder %v64, 124
    %v174 = vsel %vm173, %v170, %v172
    %v175 = vsel %vm173, %v168, %v170
    %v176 = vsel %vm173, %v166, %v168
    %v177 = vsel %vm173, %v164, %v166
    %v178 = vsel %vm173, %v172, %v164
    %179 = vset.pattern.permute.xlu0 4
    %180 = vperm.xlu0 %179, %v30
    %v181 = vpop.permute.xlu0 %180
    %v183 = vmul.f32 %v177, %v181
    %v184 = vmul.f32 %v176, %v181
    %v185 = vmul.f32 %v175, %v181
    %v186 = vmul.f32 %v174, %v181
    %v187 = vmul.f32 %v178, %v181
    %v192 = vcombine.low %v183, %v184
    %v193 = vcombine.low %v185, %v186
    %v196 = vadd.f32 %v160, %v192
    %v197 = vadd.f32 %v161, %v193
    %v198 = vadd.f32 %v162, %v187
    %v202 = vlaneseq
    %v203 = vshrl.u32 %v202, 7
    %v204 = vsub.s32 0, %v203
    %v205 = vrot.slane %v196, %v204
    %v206 = vlaneseq
    %v207 = vshrl.u32 %v206, 7
    %v208 = vsub.s32 4, %v207
    %v209 = vrot.slane %v196, %v208
    %v210 = vlaneseq
    %v211 = vshrl.u32 %v210, 7
    %v212 = vsub.s32 0, %v211
    %v213 = vrot.slane %v197, %v212
    %v214 = vlaneseq
    %v215 = vshrl.u32 %v214, 7
    %v216 = vsub.s32 4, %v215
    %v217 = vrot.slane %v197, %v216
    %v218 = vlaneseq
    %v219 = vshrl.u32 %v218, 7
    %v220 = vsub.s32 0, %v219
    %v221 = vrot.slane %v198, %v220
    %v227 = vlaneseq
    %v228 = vshrl.u32 %v227, 7
    %v229 = vsub.s32 0, %v228
    %v230 = vrot.slane %v205, %v229
    %v231 = vlaneseq
    %v232 = vshrl.u32 %v231, 7
    %v233 = vsub.s32 0, %v232
    %v234 = vrot.slane %v209, %v233
    %v235 = vlaneseq
    %v236 = vshrl.u32 %v235, 7
    %v237 = vsub.s32 0, %v236
    %v238 = vrot.slane %v213, %v237
    %v239 = vlaneseq
    %v240 = vshrl.u32 %v239, 7
    %v241 = vsub.s32 0, %v240
    %v242 = vrot.slane %v217, %v241
    %v243 = vlaneseq
    %v244 = vshrl.u32 %v243, 7
    %v245 = vsub.s32 0, %v244
    %v246 = vrot.slane %v221, %v245
    %248 = vset.pattern.permute.xlu0 0
    %249 = vperm.xlu0 %248, %v31
    %v250 = vpop.permute.xlu0 %249
    %v252 = vmul.f32 %v250, %v230
    %v253 = vmul.f32 %v250, %v234
    %v254 = vmul.f32 %v250, %v238
    %v255 = vmul.f32 %v250, %v242
    %v256 = vmul.f32 %v250, %v246
    %v257 = vlaneseq
    %v258 = vshrl.u32 %v257, 7
    %v259 = vsub.s32 1, %v258
    %v260 = vrot.slane %v196, %v259
    %v261 = vlaneseq
    %v262 = vshrl.u32 %v261, 7
    %v263 = vsub.s32 5, %v262
    %v264 = vrot.slane %v196, %v263
    %v265 = vlaneseq
    %v266 = vshrl.u32 %v265, 7
    %v267 = vsub.s32 1, %v266
    %v268 = vrot.slane %v197, %v267
    %v269 = vlaneseq
    %v270 = vshrl.u32 %v269, 7
    %v271 = vsub.s32 5, %v270
    %v272 = vrot.slane %v197, %v271
    %v273 = vlaneseq
    %v274 = vshrl.u32 %v273, 7
    %v275 = vsub.s32 1, %v274
    %v276 = vrot.slane %v198, %v275
    %v282 = vlaneseq
    %v283 = vshrl.u32 %v282, 7
    %v284 = vsub.s32 1, %v283
    %v285 = vrot.slane %v260, %v284
    %v286 = vlaneseq
    %v287 = vshrl.u32 %v286, 7
    %v288 = vsub.s32 1, %v287
    %v289 = vrot.slane %v264, %v288
    %v290 = vlaneseq
    %v291 = vshrl.u32 %v290, 7
    %v292 = vsub.s32 1, %v291
    %v293 = vrot.slane %v268, %v292
    %v294 = vlaneseq
    %v295 = vshrl.u32 %v294, 7
    %v296 = vsub.s32 1, %v295
    %v297 = vrot.slane %v272, %v296
    %v298 = vlaneseq
    %v299 = vshrl.u32 %v298, 7
    %v300 = vsub.s32 1, %v299
    %v301 = vrot.slane %v276, %v300
    %302 = vset.pattern.permute.xlu0 1
    %303 = vperm.xlu0 %302, %v31
    %v304 = vpop.permute.xlu0 %303
    %v306 = vmul.f32 %v304, %v285
    %v307 = vmul.f32 %v304, %v289
    %v308 = vmul.f32 %v304, %v293
    %v309 = vmul.f32 %v304, %v297
    %v310 = vmul.f32 %v304, %v301
    %v311 = vadd.f32 %v252, %v306
    %v312 = vadd.f32 %v253, %v307
    %v313 = vadd.f32 %v254, %v308
    %v314 = vadd.f32 %v255, %v309
    %v315 = vadd.f32 %v256, %v310
    %v316 = vlaneseq
    %v317 = vshrl.u32 %v316, 7
    %v318 = vsub.s32 2, %v317
    %v319 = vrot.slane %v196, %v318
    %v320 = vlaneseq
    %v321 = vshrl.u32 %v320, 7
    %v322 = vsub.s32 6, %v321
    %v323 = vrot.slane %v196, %v322
    %v324 = vlaneseq
    %v325 = vshrl.u32 %v324, 7
    %v326 = vsub.s32 2, %v325
    %v327 = vrot.slane %v197, %v326
    %v328 = vlaneseq
    %v329 = vshrl.u32 %v328, 7
    %v330 = vsub.s32 6, %v329
    %v331 = vrot.slane %v197, %v330
    %v332 = vlaneseq
    %v333 = vshrl.u32 %v332, 7
    %v334 = vsub.s32 2, %v333
    %v335 = vrot.slane %v198, %v334
    %v341 = vlaneseq
    %v342 = vshrl.u32 %v341, 7
    %v343 = vsub.s32 2, %v342
    %v344 = vrot.slane %v319, %v343
    %v345 = vlaneseq
    %v346 = vshrl.u32 %v345, 7
    %v347 = vsub.s32 2, %v346
    %v348 = vrot.slane %v323, %v347
    %v349 = vlaneseq
    %v350 = vshrl.u32 %v349, 7
    %v351 = vsub.s32 2, %v350
    %v352 = vrot.slane %v327, %v351
    %v353 = vlaneseq
    %v354 = vshrl.u32 %v353, 7
    %v355 = vsub.s32 2, %v354
    %v356 = vrot.slane %v331, %v355
    %v357 = vlaneseq
    %v358 = vshrl.u32 %v357, 7
    %v359 = vsub.s32 2, %v358
    %v360 = vrot.slane %v335, %v359
    %361 = vset.pattern.permute.xlu0 2
    %362 = vperm.xlu0 %361, %v31
    %v363 = vpop.permute.xlu0 %362
    %v365 = vmul.f32 %v363, %v344
    %v366 = vmul.f32 %v363, %v348
    %v367 = vmul.f32 %v363, %v352
    %v368 = vmul.f32 %v363, %v356
    %v369 = vmul.f32 %v363, %v360
    %v370 = vadd.f32 %v311, %v365
    %v371 = vadd.f32 %v312, %v366
    %v372 = vadd.f32 %v313, %v367
    %v373 = vadd.f32 %v314, %v368
    %v374 = vadd.f32 %v315, %v369
    %v375 = vlaneseq
    %v376 = vshrl.u32 %v375, 7
    %v377 = vsub.s32 3, %v376
    %v378 = vrot.slane %v196, %v377
    %v379 = vlaneseq
    %v380 = vshrl.u32 %v379, 7
    %v381 = vsub.s32 7, %v380
    %v382 = vrot.slane %v196, %v381
    %v383 = vlaneseq
    %v384 = vshrl.u32 %v383, 7
    %v385 = vsub.s32 3, %v384
    %v386 = vrot.slane %v197, %v385
    %v387 = vlaneseq
    %v388 = vshrl.u32 %v387, 7
    %v389 = vsub.s32 7, %v388
    %v390 = vrot.slane %v197, %v389
    %v391 = vlaneseq
    %v392 = vshrl.u32 %v391, 7
    %v393 = vsub.s32 3, %v392
    %v394 = vrot.slane %v198, %v393
    %v400 = vlaneseq
    %v401 = vshrl.u32 %v400, 7
    %v402 = vsub.s32 3, %v401
    %v403 = vrot.slane %v378, %v402
    %v404 = vlaneseq
    %v405 = vshrl.u32 %v404, 7
    %v406 = vsub.s32 3, %v405
    %v407 = vrot.slane %v382, %v406
    %v408 = vlaneseq
    %v409 = vshrl.u32 %v408, 7
    %v410 = vsub.s32 3, %v409
    %v411 = vrot.slane %v386, %v410
    %v412 = vlaneseq
    %v413 = vshrl.u32 %v412, 7
    %v414 = vsub.s32 3, %v413
    %v415 = vrot.slane %v390, %v414
    %v416 = vlaneseq
    %v417 = vshrl.u32 %v416, 7
    %v418 = vsub.s32 3, %v417
    %v419 = vrot.slane %v394, %v418
    %420 = vset.pattern.permute.xlu0 3
    %421 = vperm.xlu0 %420, %v31
    %v422 = vpop.permute.xlu0 %421
    %v424 = vmul.f32 %v422, %v403
    %v425 = vmul.f32 %v422, %v407
    %v426 = vmul.f32 %v422, %v411
    %v427 = vmul.f32 %v422, %v415
    %v428 = vmul.f32 %v422, %v419
    %v429 = vadd.f32 %v370, %v424
    %v430 = vadd.f32 %v371, %v425
    %v431 = vadd.f32 %v372, %v426
    %v432 = vadd.f32 %v373, %v427
    %v433 = vadd.f32 %v374, %v428
    %434 = vst [vmem:[#allocation5] sm:$0xff] %v429
    %435 = vst [vmem:[#allocation5 + $0x8] sm:$0xff] %v430
    %436 = vst [vmem:[#allocation5 + $0x10] sm:$0xff] %v431
    %437 = vst [vmem:[#allocation5 + $0x18] sm:$0xff] %v432
    %438 = vst [vmem:[#allocation5 + $0x20] sm:$0xff] %v433
    // Predicated region
    $region18: #{tpu_custom_call.1} parent=1 // pred_check
      _
    $region19: #{tpu_custom_call.1} parent=1 // pred_check_branch
      %440 = sbr.rel (0) target = $region21
    $region20: #{tpu_custom_call.1} parent=1 // pred_region
      %s442 = ssub.s32 640, 640
      %443 = vsyncadd [#allocation4], %s442
      %s445 = sshll.u32 [#allocation5], 4
      %s446 = int_to_ptr.vmem [resolvable:$true] %s445
      %448 = dma.vmem_to_hbm [thread:$0]  %s446, 640, %s3, [#allocation4]
    $region21: #{tpu_custom_call.1} parent=1 // pred_fallthru
      _
    // Predicated region
    $region22: #{tpu_custom_call.1} parent=1 // pred_check
      _
    $region23: #{tpu_custom_call.1} parent=1 // pred_check_branch
      %450 = sbr.rel (0) target = $region25
    $region24: #{tpu_custom_call.1} parent=1 // pred_region
      %451 = dma.done [#allocation4], 640
    $region25: #{tpu_custom_call.1} parent=1 // pred_fallthru
      _
    %452 = vsyncpa [#allocation3], 1
    %453 = vsyncpa [#allocation4], 1

</llo_original>
